<compile_context>
chip_gen: v5e
topology: v5e:2x2
jax: 0.10.0
libtpu: 0.0.40
codegen_flags: <defaults>
</compile_context>

<pallas_src>
import functools

import jax
import jax.numpy as jnp
import numpy as np
from jax.experimental import pallas as pl
from jax.experimental.pallas import tpu as pltpu

F32 = jnp.float32
BF16 = jnp.bfloat16
LANE = 128  # pad every feature dim to a full lane group


def _vmem():
    return pl.BlockSpec(memory_space=pltpu.MemorySpace.VMEM)


def _dot(a, b):
    return jnp.dot(a, b, preferred_element_type=F32)


def _dot_t(a, b):
    # Contract the leading (edge) axis of both operands: (E, M) x (E, K) -> (M, K).
    # "Scatter-add over nodes" expressed as a matmul.
    return jax.lax.dot_general(a, b, (((0,), (0,)), ((), ())),
                               preferred_element_type=F32)


# --------------------------- fused forward kernel -----------------------------

def _gnn_kernel(x_ref, edge_ref, ea_ref, w_ref, b_ref, o_ref, *, nMLP, nConv, K):
    n_nodes = x_ref.shape[0]
    n_edges = edge_ref.shape[0]

    x = x_ref[...]                                    # (N, 128) f32; cols >= iDim are 0
    edges = edge_ref[...]                             # (E, 2) int32  [src | dst]
    src = edges[:, 0:1]                               # (E, 1)
    dst = edges[:, 1:2]                               # (E, 1)
    ew = ea_ref[...]                                  # (E, 1) f32 edge weights

    def matmul(v, wi):
        # bf16 x bf16 on the MXU with f32 accumulation; activations stay f32.
        return jnp.dot(v.astype(BF16), w_ref[wi], preferred_element_type=F32)

    def bias(bi):
        return b_ref[pl.ds(bi, 1), :]                 # (1, 128) f32

    wi = 0  # static index into the stacked (n_mats, 128, 128) bf16 weight slab
    bi = 0  # static index into the stacked (n_bias, 128) f32 bias slab

    # ---------------------------- encoder MLP (+ReLU) -------------------------
    for _ in range(nMLP):
        x = jnp.maximum(matmul(x, wi) + bias(bi), 0.0)
        wi += 1
        bi += 1

    # ---------------------------- ChebConv (+ReLU) ----------------------------
    if nConv > 0:
        # One-hot gather/scatter matrices built in VMEM from the edge list
        # (no (E, N) f32 HBM round-trip).  gs[e, n] = (src[e] == n), gd likewise.
        node_iota = jax.lax.broadcasted_iota(jnp.int32, (n_edges, n_nodes), 1)
        gs = (node_iota == src).astype(F32)           # (E, N)
        gd = (node_iota == dst).astype(F32)           # (E, N)

        # PyG ChebConv, normalization='sym', lambda_max=2:
        #   L_hat[dst, src] = -d^{-1/2}[src] * w * d^{-1/2}[dst]   (self-loops cancel)
        # edgeAttr is the same for every conv layer -> build L once, reuse.
        deg = _dot_t(gs, ew)                          # (N, 1) scatter-add over src
        dinv = jnp.where(deg > 0, jax.lax.rsqrt(deg), 0.0)
        wn = _dot(gs, dinv) * ew * _dot(gd, dinv)     # (E, 1) normalized edge weight
        L = -_dot_t(gd, wn * gs)                      # (N, N) scaled Laplacian

        for _ in range(nConv):
            tx0 = x
            out = matmul(tx0, wi)                     # lins[0] (no per-lin bias)
            wi += 1
            if K > 1:
                tx1 = _dot(L, tx0)                    # graph propagate, kept in f32
                out = out + matmul(tx1, wi)
                wi += 1
                for _k in range(2, K):
                    tx2 = 2.0 * _dot(L, tx1) - tx0
                    out = out + matmul(tx2, wi)
                    wi += 1
                    tx0, tx1 = tx1, tx2
            x = jnp.maximum(out + bias(bi), 0.0)      # shared ChebConv bias + ReLU
            bi += 1

    # ---------------------------- decoder MLP (+ReLU) -------------------------
    for _ in range(nMLP):
        x = jnp.maximum(matmul(x, wi) + bias(bi), 0.0)
        wi += 1
        bi += 1

    o_ref[...] = x                                    # lane-dense (N, 128) store


# ------------------------------ params & wrapper -------------------------------

def init_params(key, iDim, HLD, oDim, nMLP, nConv, K, lane=LANE):
    """Raw (unpadded, f32) params for the reference + packed slabs for the kernel."""
    def nxt():
        nonlocal key
        key, sub = jax.random.split(key)
        return sub

    def bf16_exact(a):
        # Keep raw weights bf16-representable so the bf16 slab loses nothing.
        return a.astype(BF16).astype(F32)

    def pad_mat(a):
        return jnp.zeros((lane, lane), F32).at[:a.shape[0], :a.shape[1]].set(a)

    def pad_vec(a):
        return jnp.zeros((lane,), F32).at[:a.shape[0]].set(a)

    raw = dict(enc=[], conv=[], dec=[])
    w_mats, b_vecs = [], []

    # encoder: Linear(iDim,HLD)+ReLU, then (nMLP-1) x [Linear(HLD,HLD)+ReLU]
    for n in range(nMLP):
        ic = iDim if n == 0 else HLD
        w = bf16_exact(jax.random.normal(nxt(), (ic, HLD), F32) / jnp.sqrt(ic))
        b = bf16_exact(jax.random.normal(nxt(), (HLD,), F32) * 0.1)
        raw["enc"].append((w, b))
        w_mats.append(pad_mat(w))
        b_vecs.append(pad_vec(b))

    # ChebConv layers: K weight matrices (bias=False) + one shared bias each
    for _ in range(nConv):
        w = bf16_exact(jax.random.normal(nxt(), (K, HLD, HLD), F32) / jnp.sqrt(HLD))
        b = bf16_exact(jax.random.normal(nxt(), (HLD,), F32) * 0.1)
        raw["conv"].append((w, b))
        for k in range(K):
            w_mats.append(pad_mat(w[k]))
        b_vecs.append(pad_vec(b))

    # decoder: (nMLP-1) x [Linear(HLD,HLD)+ReLU], then Linear(HLD,oDim)+ReLU
    for n in range(nMLP):
        oc = oDim if n == nMLP - 1 else HLD
        w = bf16_exact(jax.random.normal(nxt(), (HLD, oc), F32) / jnp.sqrt(HLD))
        b = bf16_exact(jax.random.normal(nxt(), (oc,), F32) * 0.1)
        raw["dec"].append((w, b))
        w_mats.append(pad_mat(w))
        b_vecs.append(pad_vec(b))

    w_slab = jnp.stack(w_mats).astype(BF16)   # (2*nMLP + nConv*K, 128, 128) bf16
    b_slab = jnp.stack(b_vecs)                # (2*nMLP + nConv, 128) f32

    cfg = dict(nMLP=nMLP, nConv=nConv, K=K, iDim=iDim, HLD=HLD, oDim=oDim)
    return dict(raw=raw, w_slab=w_slab, b_slab=b_slab, cfg=cfg)


def gnn_forward(params, x, edge_index, edge_attr):
    cfg = params["cfg"]
    n = x.shape[0]
    e = edge_index.shape[1]
    x_p = jnp.zeros((n, LANE), F32).at[:, :cfg["iDim"]].set(x)
    edges = edge_index.T.astype(jnp.int32)            # (E, 2): [src | dst]
    ea = edge_attr.reshape(e, 1).astype(F32)

    kernel = functools.partial(_gnn_kernel, nMLP=cfg["nMLP"],
                               nConv=cfg["nConv"], K=cfg["K"])
    out_p = pl.pallas_call(
        kernel,
        out_shape=jax.ShapeDtypeStruct((n, LANE), F32),
        in_specs=[_vmem()] * 5,                        # x, edges, ea, w_slab, b_slab
        out_specs=_vmem(),
    )(x_p, edges, ea, params["w_slab"], params["b_slab"])
    return out_p[:, :cfg["oDim"]]


# ------------------------------ pure-JAX reference ------------------------------

def reference_forward(params, x, edge_index, edge_attr):
    raw, cfg = params["raw"], params["cfg"]
    K = cfg["K"]
    src, dst = edge_index[0], edge_index[1]
    n = x.shape[0]

    for w, b in raw["enc"]:
        x = jax.nn.relu(x @ w + b)

    for w, b in raw["conv"]:
        # PyG ChebConv (sym, lambda_max=2): L_hat = -D^{-1/2} A D^{-1/2}
        deg = jnp.zeros((n,), F32).at[src].add(edge_attr)
        dinv = jnp.where(deg > 0, 1.0 / jnp.sqrt(deg), 0.0)
        wn = dinv[src] * edge_attr * dinv[dst]
        L = jnp.zeros((n, n), F32).at[dst, src].add(-wn)
        tx0 = x
        out = tx0 @ w[0]
        if K > 1:
            tx1 = L @ tx0
            out = out + tx1 @ w[1]
            for k in range(2, K):
                tx2 = 2.0 * (L @ tx1) - tx0
                out = out + tx2 @ w[k]
                tx0, tx1 = tx1, tx2
        x = jax.nn.relu(out + b)

    for w, b in raw["dec"]:
        x = jax.nn.relu(x @ w + b)
    return x


if __name__ == "__main__":
    key = jax.random.PRNGKey(0)
    N, iDim, HLD, oDim = 16, 8, 32, 4
    nMLP, nConv, K = 2, 1, 2

    # bidirectional ring graph: no self-loops, no duplicate edges, E = 32
    idx = jnp.arange(N, dtype=jnp.int32)
    src = jnp.concatenate([idx, idx])
    dst = jnp.concatenate([(idx + 1) % N, (idx - 1) % N])
    edge_index = jnp.stack([src, dst]).astype(jnp.int32)          # (2, 32)

    k1, k2, k3 = jax.random.split(key, 3)
    x = jax.random.normal(k1, (N, iDim), F32)
    edge_attr = jax.random.uniform(k2, (edge_index.shape[1],), F32, 0.1, 1.0)
    params = init_params(k3, iDim, HLD, oDim, nMLP, nConv, K)

    out = gnn_forward(params, x, edge_index, edge_attr)
    jax.block_until_ready(out)
    assert out.shape == (N, oDim) and out.dtype == F32

    ref = reference_forward(params, x, edge_index, edge_attr)
    np.testing.assert_allclose(np.asarray(out), np.asarray(ref), rtol=5e-2, atol=5e-2)
    print("KERNEL_OK")
</pallas_src>

<mosaic_0001>
module attributes {stable_mosaic.version = 11 : i64} {
  func.func @_gnn_kernel(%arg0: memref<16x128xf32, #tpu.memory_space<vmem>>, %arg1: memref<32x2xi32, #tpu.memory_space<vmem>>, %arg2: memref<32x1xf32, #tpu.memory_space<vmem>>, %arg3: memref<6x128x128xbf16, #tpu.memory_space<vmem>>, %arg4: memref<5x128xf32, #tpu.memory_space<vmem>>, %arg5: memref<16x128xf32, #tpu.memory_space<vmem>>) attributes {dimension_semantics = [], scalar_prefetch = 0 : i64, scratch_operands = 0 : i64, tpu.core_type = #tpu.core_type<tc>} {
    %c0 = arith.constant 0 : index
    %c0_0 = arith.constant 0 : index
    %0 = vector.load %arg0[%c0, %c0_0] : memref<16x128xf32, #tpu.memory_space<vmem>>, vector<16x128xf32>
    %c0_1 = arith.constant 0 : index
    %c0_2 = arith.constant 0 : index
    %1 = vector.load %arg1[%c0_1, %c0_2] : memref<32x2xi32, #tpu.memory_space<vmem>>, vector<32x2xi32>
    %2 = vector.extract_strided_slice %1 {offsets = [0, 0], sizes = [32, 1], strides = [1, 1]} : vector<32x2xi32> to vector<32x1xi32>
    %3 = vector.extract_strided_slice %1 {offsets = [0, 1], sizes = [32, 1], strides = [1, 1]} : vector<32x2xi32> to vector<32x1xi32>
    %c0_3 = arith.constant 0 : index
    %c0_4 = arith.constant 0 : index
    %4 = vector.load %arg2[%c0_3, %c0_4] : memref<32x1xf32, #tpu.memory_space<vmem>>, vector<32x1xf32>
    %5 = arith.truncf %0 : vector<16x128xf32> to vector<16x128xbf16>
    %c0_5 = arith.constant 0 : index
    %c0_6 = arith.constant 0 : index
    %c0_7 = arith.constant 0 : index
    %6 = vector.load %arg3[%c0_5, %c0_6, %c0_7] : memref<6x128x128xbf16, #tpu.memory_space<vmem>>, vector<1x128x128xbf16>
    %7 = vector.shape_cast %6 : vector<1x128x128xbf16> to vector<128x128xbf16>
    %cst = arith.constant dense<0.000000e+00> : vector<16x128xf32>
    %8 = tpu.matmul %5, %7, %cst {dimension_numbers = #tpu.dot_dimension_numbers<[1], [0], [0], [1], [0, 0, 1, 1], [], []>} : vector<16x128xbf16>, vector<128x128xbf16>, vector<16x128xf32> -> vector<16x128xf32>
    %c0_8 = arith.constant 0 : index
    %c0_9 = arith.constant 0 : index
    %9 = vector.load %arg4[%c0_8, %c0_9] : memref<5x128xf32, #tpu.memory_space<vmem>>, vector<1x128xf32>
    %10 = vector.broadcast %9 : vector<1x128xf32> to vector<16x128xf32>
    %11 = arith.addf %8, %10 : vector<16x128xf32>
    %cst_10 = arith.constant 0.000000e+00 : f32
    %12 = vector.broadcast %cst_10 : f32 to vector<16x128xf32>
    %13 = arith.maximumf %11, %12 : vector<16x128xf32>
    %14 = arith.truncf %13 : vector<16x128xf32> to vector<16x128xbf16>
    %c1 = arith.constant 1 : index
    %c0_11 = arith.constant 0 : index
    %c0_12 = arith.constant 0 : index
    %15 = vector.load %arg3[%c1, %c0_11, %c0_12] : memref<6x128x128xbf16, #tpu.memory_space<vmem>>, vector<1x128x128xbf16>
    %16 = vector.shape_cast %15 : vector<1x128x128xbf16> to vector<128x128xbf16>
    %cst_13 = arith.constant dense<0.000000e+00> : vector<16x128xf32>
    %17 = tpu.matmul %14, %16, %cst_13 {dimension_numbers = #tpu.dot_dimension_numbers<[1], [0], [0], [1], [0, 0, 1, 1], [], []>} : vector<16x128xbf16>, vector<128x128xbf16>, vector<16x128xf32> -> vector<16x128xf32>
    %c1_14 = arith.constant 1 : index
    %c0_15 = arith.constant 0 : index
    %18 = vector.load %arg4[%c1_14, %c0_15] : memref<5x128xf32, #tpu.memory_space<vmem>>, vector<1x128xf32>
    %19 = vector.broadcast %18 : vector<1x128xf32> to vector<16x128xf32>
    %20 = arith.addf %17, %19 : vector<16x128xf32>
    %cst_16 = arith.constant 0.000000e+00 : f32
    %21 = vector.broadcast %cst_16 : f32 to vector<16x128xf32>
    %22 = arith.maximumf %20, %21 : vector<16x128xf32>
    %23 = tpu.iota {dimensions = array<i32: 1>} : vector<32x16xi32>
    %24 = vector.broadcast %2 : vector<32x1xi32> to vector<32x16xi32>
    %25 = arith.cmpi eq, %23, %24 : vector<32x16xi32>
    %26 = arith.extui %25 : vector<32x16xi1> to vector<32x16xi32>
    %27 = arith.sitofp %26 : vector<32x16xi32> to vector<32x16xf32>
    %28 = vector.broadcast %3 : vector<32x1xi32> to vector<32x16xi32>
    %29 = arith.cmpi eq, %23, %28 : vector<32x16xi32>
    %30 = arith.extui %29 : vector<32x16xi1> to vector<32x16xi32>
    %31 = arith.sitofp %30 : vector<32x16xi32> to vector<32x16xf32>
    %cst_17 = arith.constant dense<0.000000e+00> : vector<16x1xf32>
    %32 = tpu.matmul %27, %4, %cst_17 {dimension_numbers = #tpu.dot_dimension_numbers<[0], [0], [1], [1], [0, 1, 1, 1], [], []>} : vector<32x16xf32>, vector<32x1xf32>, vector<16x1xf32> -> vector<16x1xf32>
    %cst_18 = arith.constant 0.000000e+00 : f32
    %33 = vector.broadcast %cst_18 : f32 to vector<16x1xf32>
    %34 = arith.cmpf ogt, %32, %33 : vector<16x1xf32>
    %35 = math.rsqrt %32 : vector<16x1xf32>
    %cst_19 = arith.constant 0.000000e+00 : f32
    %36 = vector.broadcast %cst_19 : f32 to vector<16x1xf32>
    %37 = arith.select %34, %35, %36 : vector<16x1xi1>, vector<16x1xf32>
    %cst_20 = arith.constant dense<0.000000e+00> : vector<32x1xf32>
    %38 = tpu.matmul %27, %37, %cst_20 {dimension_numbers = #tpu.dot_dimension_numbers<[1], [0], [0], [1], [0, 0, 1, 1], [], []>} : vector<32x16xf32>, vector<16x1xf32>, vector<32x1xf32> -> vector<32x1xf32>
    %39 = arith.mulf %38, %4 : vector<32x1xf32>
    %cst_21 = arith.constant dense<0.000000e+00> : vector<32x1xf32>
    %40 = tpu.matmul %31, %37, %cst_21 {dimension_numbers = #tpu.dot_dimension_numbers<[1], [0], [0], [1], [0, 0, 1, 1], [], []>} : vector<32x16xf32>, vector<16x1xf32>, vector<32x1xf32> -> vector<32x1xf32>
    %41 = arith.mulf %39, %40 : vector<32x1xf32>
    %42 = vector.broadcast %41 : vector<32x1xf32> to vector<32x16xf32>
    %43 = arith.mulf %42, %27 : vector<32x16xf32>
    %cst_22 = arith.constant dense<0.000000e+00> : vector<16x16xf32>
    %44 = tpu.matmul %31, %43, %cst_22 {dimension_numbers = #tpu.dot_dimension_numbers<[0], [0], [1], [1], [0, 1, 1, 1], [], []>} : vector<32x16xf32>, vector<32x16xf32>, vector<16x16xf32> -> vector<16x16xf32>
    %cst_23 = arith.constant 0.000000e+00 : f32
    %45 = vector.broadcast %cst_23 : f32 to vector<16x16xf32>
    %46 = arith.subf %45, %44 : vector<16x16xf32>
    %47 = arith.truncf %22 : vector<16x128xf32> to vector<16x128xbf16>
    %c2 = arith.constant 2 : index
    %c0_24 = arith.constant 0 : index
    %c0_25 = arith.constant 0 : index
    %48 = vector.load %arg3[%c2, %c0_24, %c0_25] : memref<6x128x128xbf16, #tpu.memory_space<vmem>>, vector<1x128x128xbf16>
    %49 = vector.shape_cast %48 : vector<1x128x128xbf16> to vector<128x128xbf16>
    %cst_26 = arith.constant dense<0.000000e+00> : vector<16x128xf32>
    %50 = tpu.matmul %47, %49, %cst_26 {dimension_numbers = #tpu.dot_dimension_numbers<[1], [0], [0], [1], [0, 0, 1, 1], [], []>} : vector<16x128xbf16>, vector<128x128xbf16>, vector<16x128xf32> -> vector<16x128xf32>
    %cst_27 = arith.constant dense<0.000000e+00> : vector<16x128xf32>
    %51 = tpu.matmul %46, %22, %cst_27 {dimension_numbers = #tpu.dot_dimension_numbers<[1], [0], [0], [1], [0, 0, 1, 1], [], []>} : vector<16x16xf32>, vector<16x128xf32>, vector<16x128xf32> -> vector<16x128xf32>
    %52 = arith.truncf %51 : vector<16x128xf32> to vector<16x128xbf16>
    %c3 = arith.constant 3 : index
    %c0_28 = arith.constant 0 : index
    %c0_29 = arith.constant 0 : index
    %53 = vector.load %arg3[%c3, %c0_28, %c0_29] : memref<6x128x128xbf16, #tpu.memory_space<vmem>>, vector<1x128x128xbf16>
    %54 = vector.shape_cast %53 : vector<1x128x128xbf16> to vector<128x128xbf16>
    %cst_30 = arith.constant dense<0.000000e+00> : vector<16x128xf32>
    %55 = tpu.matmul %52, %54, %cst_30 {dimension_numbers = #tpu.dot_dimension_numbers<[1], [0], [0], [1], [0, 0, 1, 1], [], []>} : vector<16x128xbf16>, vector<128x128xbf16>, vector<16x128xf32> -> vector<16x128xf32>
    %56 = arith.addf %50, %55 : vector<16x128xf32>
    %c2_31 = arith.constant 2 : index
    %c0_32 = arith.constant 0 : index
    %57 = vector.load %arg4[%c2_31, %c0_32] : memref<5x128xf32, #tpu.memory_space<vmem>>, vector<1x128xf32>
    %58 = vector.broadcast %57 : vector<1x128xf32> to vector<16x128xf32>
    %59 = arith.addf %56, %58 : vector<16x128xf32>
    %cst_33 = arith.constant 0.000000e+00 : f32
    %60 = vector.broadcast %cst_33 : f32 to vector<16x128xf32>
    %61 = arith.maximumf %59, %60 : vector<16x128xf32>
    %62 = arith.truncf %61 : vector<16x128xf32> to vector<16x128xbf16>
    %c4 = arith.constant 4 : index
    %c0_34 = arith.constant 0 : index
    %c0_35 = arith.constant 0 : index
    %63 = vector.load %arg3[%c4, %c0_34, %c0_35] : memref<6x128x128xbf16, #tpu.memory_space<vmem>>, vector<1x128x128xbf16>
    %64 = vector.shape_cast %63 : vector<1x128x128xbf16> to vector<128x128xbf16>
    %cst_36 = arith.constant dense<0.000000e+00> : vector<16x128xf32>
    %65 = tpu.matmul %62, %64, %cst_36 {dimension_numbers = #tpu.dot_dimension_numbers<[1], [0], [0], [1], [0, 0, 1, 1], [], []>} : vector<16x128xbf16>, vector<128x128xbf16>, vector<16x128xf32> -> vector<16x128xf32>
    %c3_37 = arith.constant 3 : index
    %c0_38 = arith.constant 0 : index
    %66 = vector.load %arg4[%c3_37, %c0_38] : memref<5x128xf32, #tpu.memory_space<vmem>>, vector<1x128xf32>
    %67 = vector.broadcast %66 : vector<1x128xf32> to vector<16x128xf32>
    %68 = arith.addf %65, %67 : vector<16x128xf32>
    %cst_39 = arith.constant 0.000000e+00 : f32
    %69 = vector.broadcast %cst_39 : f32 to vector<16x128xf32>
    %70 = arith.maximumf %68, %69 : vector<16x128xf32>
    %71 = arith.truncf %70 : vector<16x128xf32> to vector<16x128xbf16>
    %c5 = arith.constant 5 : index
    %c0_40 = arith.constant 0 : index
    %c0_41 = arith.constant 0 : index
    %72 = vector.load %arg3[%c5, %c0_40, %c0_41] : memref<6x128x128xbf16, #tpu.memory_space<vmem>>, vector<1x128x128xbf16>
    %73 = vector.shape_cast %72 : vector<1x128x128xbf16> to vector<128x128xbf16>
    %cst_42 = arith.constant dense<0.000000e+00> : vector<16x128xf32>
    %74 = tpu.matmul %71, %73, %cst_42 {dimension_numbers = #tpu.dot_dimension_numbers<[1], [0], [0], [1], [0, 0, 1, 1], [], []>} : vector<16x128xbf16>, vector<128x128xbf16>, vector<16x128xf32> -> vector<16x128xf32>
    %c4_43 = arith.constant 4 : index
    %c0_44 = arith.constant 0 : index
    %75 = vector.load %arg4[%c4_43, %c0_44] : memref<5x128xf32, #tpu.memory_space<vmem>>, vector<1x128xf32>
    %76 = vector.broadcast %75 : vector<1x128xf32> to vector<16x128xf32>
    %77 = arith.addf %74, %76 : vector<16x128xf32>
    %cst_45 = arith.constant 0.000000e+00 : f32
    %78 = vector.broadcast %cst_45 : f32 to vector<16x128xf32>
    %79 = arith.maximumf %77, %78 : vector<16x128xf32>
    %c0_46 = arith.constant 0 : index
    %c0_47 = arith.constant 0 : index
    %80 = vector.load %arg5[%c0_46, %c0_47] : memref<16x128xf32, #tpu.memory_space<vmem>>, vector<16x128xf32>
    tpu.vector_store %arg5[%c0_46, %c0_47], %79 {strides = array<i32>} : memref<16x128xf32, #tpu.memory_space<vmem>>, vector<16x128xf32>,
    return
  }
}

</mosaic_0001>

<llo_original>
// kernel: tpu_custom_call.1
$region0: #{tpu_custom_call.1}
  #allocation0 [shape = 'u32[]', space=smem, size = 0x4, offset = 0x4, fixed_abs, tag = 'smem constant byte address 0x4 - core index']
  #allocation1 [shape = 'u32[72,128]{1,0:T(1,128)}', space=vmem, size = 0x9000, scoped, tag = 'internal scratch']
  %s0 = inlined_call_operand.vmem [shape: f32[16,128], index: 0, kind: input, shape index: {}]
  %s1 = inlined_call_operand.vmem [shape: s32[32,2], index: 1, kind: input, shape index: {}]
  %s2 = inlined_call_operand.vmem [shape: f32[32,1], index: 2, kind: input, shape index: {}]
  %s3 = inlined_call_operand.hbm [shape: bf16[6,128,128], index: 3, kind: input, shape index: {}]
  %s4 = inlined_call_operand.vmem [shape: f32[5,128], index: 4, kind: input, shape index: {}]
  %s5 = inlined_call_operand.hbm [shape: f32[16,128], index: 5, kind: output, shape index: {}]
  %s6 = sld [smem:[#allocation0]]
  $region34: #{tpu_custom_call.1} parent=0
    _
  %s8 = ssub.s32 1, %s6
  %s9 = scalar_select 0, %s8, %s6
  $region1: #{tpu_custom_call.1} parent=0
    #allocation2 [shape = 'u8[196608]{0}', space=vmem, size = 0x30000, scoped, tag = 'input window, operand 3, single buffered']
    #allocation3 [shape = 's32[1]{0}', space=sflag, size = 0x4, scoped, tag = 'scoped memory for tpu_custom_call.1']
    #allocation4 [shape = 's32[1]{0}', space=sflag, size = 0x4, scoped, tag = 'scoped memory for tpu_custom_call.1']
    #allocation5 [shape = 'u8[8192]{0}', space=vmem, size = 0x2000, scoped, tag = 'output window, operand 0, single buffered']
    %10 = vsyncpa [#allocation3], 0
    %11 = vsyncpa [#allocation4], 0
    // Predicated region
    $region2: #{tpu_custom_call.1} parent=1 // pred_check
      _
    $region3: #{tpu_custom_call.1} parent=1 // pred_check_branch
      %13 = sbr.rel (0) target = $region5
    $region4: #{tpu_custom_call.1} parent=1 // pred_region
      _
    $region5: #{tpu_custom_call.1} parent=1 // pred_fallthru
      _
    // Predicated region
    $region6: #{tpu_custom_call.1} parent=1 // pred_check
      _
    $region7: #{tpu_custom_call.1} parent=1 // pred_check_branch
      %15 = sbr.rel (0) target = $region9
    $region8: #{tpu_custom_call.1} parent=1 // pred_region
      _
    $region9: #{tpu_custom_call.1} parent=1 // pred_fallthru
      _
    // Predicated region
    $region10: #{tpu_custom_call.1} parent=1 // pred_check
      _
    $region11: #{tpu_custom_call.1} parent=1 // pred_check_branch
      %17 = sbr.rel (0) target = $region13
    $region12: #{tpu_custom_call.1} parent=1 // pred_region
      _
    $region13: #{tpu_custom_call.1} parent=1 // pred_fallthru
      _
    // Predicated region
    $region14: #{tpu_custom_call.1} parent=1 // pred_check
      _
    $region15: #{tpu_custom_call.1} parent=1 // pred_check_branch
      %19 = sbr.rel (0) target = $region17
    $region16: #{tpu_custom_call.1} parent=1 // pred_region
      %21 = vsyncadd [#allocation3], 0
      %s22 = sshll.u32 %s3, 4
      %s23 = int_to_ptr.hbm [resolvable:$true] %s22
      %s24 = sshll.u32 [#allocation2], 4
      %s25 = int_to_ptr.vmem [resolvable:$true] %s24
      %30 = dma.hbm_to_vmem [thread:$0]  %s23, 6144, %s25, [#allocation3], 64, 64, 4
    $region17: #{tpu_custom_call.1} parent=1 // pred_fallthru
      _
    // Predicated region
    $region18: #{tpu_custom_call.1} parent=1 // pred_check
      _
    $region19: #{tpu_custom_call.1} parent=1 // pred_check_branch
      %32 = sbr.rel (0) target = $region21
    $region20: #{tpu_custom_call.1} parent=1 // pred_region
      _
    $region21: #{tpu_custom_call.1} parent=1 // pred_fallthru
      _
    // Predicated region
    $region22: #{tpu_custom_call.1} parent=1 // pred_check
      _
    $region23: #{tpu_custom_call.1} parent=1 // pred_check_branch
      %34 = sbr.rel (0) target = $region25
    $region24: #{tpu_custom_call.1} parent=1 // pred_region
      %36 = dma.done [#allocation3], 6144
    $region25: #{tpu_custom_call.1} parent=1 // pred_fallthru
      _
    %v37 = vld [vmem:[%s0] sm:$0xff]
    %v38 = vld [vmem:[%s0 + $0x8] sm:$0xff]
    %v39 = vld [vmem:[%s1] sm:$0xff]
    %v40 = vld [vmem:[%s1 + $0x8] sm:$0xff]
    %v41 = vld [vmem:[%s1 + $0x10] sm:$0xff]
    %v42 = vld [vmem:[%s1 + $0x18] sm:$0xff]
    %v43 = vld [vmem:[%s2] sm:$0xff]
    %v44 = vld [vmem:[%s2 + $0x8] sm:$0xff]
    %v45 = vld [vmem:[%s2 + $0x10] sm:$0xff]
    %v46 = vld [vmem:[%s2 + $0x18] sm:$0xff]
    %v47 = vpack.c.bf16 %v38, %v37
    %v48 = vld [vmem:[#allocation2] sm:$0xf]
    %v49 = vld [vmem:[#allocation2 + $0x4] sm:$0xf]
    %v50 = vld [vmem:[#allocation2 + $0x8] sm:$0xf]
    %v51 = vld [vmem:[#allocation2 + $0xc] sm:$0xf]
    %v52 = vld [vmem:[#allocation2 + $0x10] sm:$0xf]
    %v53 = vld [vmem:[#allocation2 + $0x14] sm:$0xf]
    %v54 = vld [vmem:[#allocation2 + $0x18] sm:$0xf]
    %v55 = vld [vmem:[#allocation2 + $0x1c] sm:$0xf]
    %v56 = vld [vmem:[#allocation2 + $0x20] sm:$0xf]
    %v57 = vld [vmem:[#allocation2 + $0x24] sm:$0xf]
    %v58 = vld [vmem:[#allocation2 + $0x28] sm:$0xf]
    %v59 = vld [vmem:[#allocation2 + $0x2c] sm:$0xf]
    %v60 = vld [vmem:[#allocation2 + $0x30] sm:$0xf]
    %v61 = vld [vmem:[#allocation2 + $0x34] sm:$0xf]
    %v62 = vld [vmem:[#allocation2 + $0x38] sm:$0xf]
    %v63 = vld [vmem:[#allocation2 + $0x3c] sm:$0xf]
    %v64 = vld [vmem:[%s4] sm:$0x1]
    %v65 = vperm.slane %v64, 0
    %v82 = vunpack.c.l.b16 %v48
    %v83 = vunpack.c.l.b16 %v49
    %v84 = vunpack.c.l.b16 %v50
    %v85 = vunpack.c.l.b16 %v51
    %v86 = vunpack.c.l.b16 %v52
    %v87 = vunpack.c.l.b16 %v53
    %v88 = vunpack.c.l.b16 %v54
    %v89 = vunpack.c.l.b16 %v55
    %v90 = vunpack.c.l.b16 %v56
    %v91 = vunpack.c.l.b16 %v57
    %v92 = vunpack.c.l.b16 %v58
    %v93 = vunpack.c.l.b16 %v59
    %v94 = vunpack.c.l.b16 %v60
    %v95 = vunpack.c.l.b16 %v61
    %v96 = vunpack.c.l.b16 %v62
    %v97 = vunpack.c.l.b16 %v63
    %v98 = vpack.c.b16 %v83, %v82
    %v99 = vpack.c.b16 %v85, %v84
    %v100 = vpack.c.b16 %v87, %v86
    %v101 = vpack.c.b16 %v89, %v88
    %v102 = vpack.c.b16 %v91, %v90
    %v103 = vpack.c.b16 %v93, %v92
    %v104 = vpack.c.b16 %v95, %v94
    %v105 = vpack.c.b16 %v97, %v96
    %114 = vmatpush.bf16.msra.mxu0 %v105
    %115 = vmatpush.bf16.msra.mxu0 %v104
    %116 = vmatpush.bf16.msra.mxu0 %v103
    %117 = vmatpush.bf16.msra.mxu0 %v102
    %118 = vmatpush.bf16.msra.mxu0 %v101
    %119 = vmatpush.bf16.msra.mxu0 %v100
    %120 = vmatpush.bf16.msra.mxu0 %v99
    %121 = vmatpush.bf16.msra.mxu0 %v98
    %122 = vmatmul.bf16.gmra.mxu0 %v47
    %v123 = vpop.f32.mrf.mxu0
    %v124 = vadd.f32 %v65, %v123
    %v125 = vpop.f32.mrf.mxu0
    %v126 = vadd.f32 %v65, %v125
    %127 = vdwg.mxu0
    %v128 = vmax.f32 %v124, 0.0
    %v129 = vmax.f32 %v126, 0.0
    %v130 = vpack.c.bf16 %v129, %v128
    %s131 = scalar_lea.vmem [#allocation2], 64
    %v132 = vld [vmem:[%s131] sm:$0xf]
    %v133 = vld [vmem:[%s131 + $0x4] sm:$0xf]
    %v134 = vld [vmem:[%s131 + $0x8] sm:$0xf]
    %v135 = vld [vmem:[%s131 + $0xc] sm:$0xf]
    %v136 = vld [vmem:[%s131 + $0x10] sm:$0xf]
    %v137 = vld [vmem:[%s131 + $0x14] sm:$0xf]
    %v138 = vld [vmem:[%s131 + $0x18] sm:$0xf]
    %v139 = vld [vmem:[%s131 + $0x1c] sm:$0xf]
    %v140 = vld [vmem:[%s131 + $0x20] sm:$0xf]
    %v141 = vld [vmem:[%s131 + $0x24] sm:$0xf]
    %v142 = vld [vmem:[%s131 + $0x28] sm:$0xf]
    %v143 = vld [vmem:[%s131 + $0x2c] sm:$0xf]
    %v144 = vld [vmem:[%s131 + $0x30] sm:$0xf]
    %v145 = vld [vmem:[%s131 + $0x34] sm:$0xf]
    %v146 = vld [vmem:[%s131 + $0x38] sm:$0xf]
    %v147 = vld [vmem:[%s131 + $0x3c] sm:$0xf]
    %v148 = vld [vmem:[%s4 + $0x1] sm:$0x1]
    %v149 = vperm.slane %v148, 0
    %v166 = vunpack.c.l.b16 %v132
    %v167 = vunpack.c.l.b16 %v133
    %v168 = vunpack.c.l.b16 %v134
    %v169 = vunpack.c.l.b16 %v135
    %v170 = vunpack.c.l.b16 %v136
    %v171 = vunpack.c.l.b16 %v137
    %v172 = vunpack.c.l.b16 %v138
    %v173 = vunpack.c.l.b16 %v139
    %v174 = vunpack.c.l.b16 %v140
    %v175 = vunpack.c.l.b16 %v141
    %v176 = vunpack.c.l.b16 %v142
    %v177 = vunpack.c.l.b16 %v143
    %v178 = vunpack.c.l.b16 %v144
    %v179 = vunpack.c.l.b16 %v145
    %v180 = vunpack.c.l.b16 %v146
    %v181 = vunpack.c.l.b16 %v147
    %v182 = vpack.c.b16 %v167, %v166
    %v183 = vpack.c.b16 %v169, %v168
    %v184 = vpack.c.b16 %v171, %v170
    %v185 = vpack.c.b16 %v173, %v172
    %v186 = vpack.c.b16 %v175, %v174
    %v187 = vpack.c.b16 %v177, %v176
    %v188 = vpack.c.b16 %v179, %v178
    %v189 = vpack.c.b16 %v181, %v180
    %198 = vmatpush.bf16.msra.mxu0 %v189
    %199 = vmatpush.bf16.msra.mxu0 %v188
    %200 = vmatpush.bf16.msra.mxu0 %v187
    %201 = vmatpush.bf16.msra.mxu0 %v186
    %202 = vmatpush.bf16.msra.mxu0 %v185
    %203 = vmatpush.bf16.msra.mxu0 %v184
    %204 = vmatpush.bf16.msra.mxu0 %v183
    %205 = vmatpush.bf16.msra.mxu0 %v182
    %206 = vmatmul.bf16.gmra.mxu0 %v130
    %v207 = vpop.f32.mrf.mxu0
    %v208 = vadd.f32 %v149, %v207
    %v209 = vpop.f32.mrf.mxu0
    %v210 = vadd.f32 %v149, %v209
    %211 = vdwg.mxu0
    %v212 = vmax.f32 %v208, 0.0
    %v213 = vmax.f32 %v210, 0.0
    %v214 = vlaneseq
    %v215 = vand.u32 %v214, 127
    %216 = vset.pattern.permute.xlu0 0
    %217 = vperm.xlu0 %216, %v39
    %v218 = vpop.permute.xlu0 %217
    %219 = vset.pattern.permute.xlu0 0
    %220 = vperm.xlu0 %219, %v40
    %v221 = vpop.permute.xlu0 %220
    %222 = vset.pattern.permute.xlu0 0
    %223 = vperm.xlu0 %222, %v41
    %v224 = vpop.permute.xlu0 %223
    %225 = vset.pattern.permute.xlu0 0
    %226 = vperm.xlu0 %225, %v42
    %v227 = vpop.permute.xlu0 %226
    %vm228 = vcmp.eq.s32.totalorder %v215, %v218
    %vm229 = vcmp.eq.s32.totalorder %v215, %v221
    %vm230 = vcmp.eq.s32.totalorder %v215, %v224
    %vm231 = vcmp.eq.s32.totalorder %v215, %v227
    %v232 = vsel %vm228, 1, 0
    %v233 = vsel %vm229, 1, 0
    %v234 = vsel %vm230, 1, 0
    %v235 = vsel %vm231, 1, 0
    %v236 = vcvt.s32.f32 %v232
    %v237 = vcvt.s32.f32 %v233
    %v238 = vcvt.s32.f32 %v234
    %v239 = vcvt.s32.f32 %v235
    %240 = vset.pattern.permute.xlu0 1
    %241 = vperm.xlu0 %240, %v39
    %v242 = vpop.permute.xlu0 %241
    %243 = vset.pattern.permute.xlu0 1
    %244 = vperm.xlu0 %243, %v40
    %v245 = vpop.permute.xlu0 %244
    %246 = vset.pattern.permute.xlu0 1
    %247 = vperm.xlu0 %246, %v41
    %v248 = vpop.permute.xlu0 %247
    %249 = vset.pattern.permute.xlu0 1
    %250 = vperm.xlu0 %249, %v42
    %v251 = vpop.permute.xlu0 %250
    %vm252 = vcmp.eq.s32.totalorder %v215, %v242
    %vm253 = vcmp.eq.s32.totalorder %v215, %v245
    %vm254 = vcmp.eq.s32.totalorder %v215, %v248
    %vm255 = vcmp.eq.s32.totalorder %v215, %v251
    %v256 = vsel %vm252, 1, 0
    %v257 = vsel %vm253, 1, 0
    %v258 = vsel %vm254, 1, 0
    %v259 = vsel %vm255, 1, 0
    %v260 = vcvt.s32.f32 %v256
    %v261 = vcvt.s32.f32 %v257
    %v262 = vcvt.s32.f32 %v258
    %v263 = vcvt.s32.f32 %v259
    %264 = vxpose.xlu0.b32.start [1/16] %v236, 128
    %265 = vxpose.xlu0.b32.cont [2/16] %v237, 128
    %266 = vxpose.xlu0.b32.cont [3/16] %v238, 128
    %267 = vxpose.xlu0.b32.cont [4/16] %v239, 128
    %268 = vxpose.xlu0.b32.cont [5/16] 0.0, 128
    %269 = vxpose.xlu0.b32.cont [6/16] 0.0, 128
    %270 = vxpose.xlu0.b32.cont [7/16] 0.0, 128
    %271 = vxpose.xlu0.b32.cont [8/16] 0.0, 128
    %272 = vxpose.xlu0.b32.cont [9/16] 0.0, 128
    %273 = vxpose.xlu0.b32.cont [10/16] 0.0, 128
    %274 = vxpose.xlu0.b32.cont [11/16] 0.0, 128
    %275 = vxpose.xlu0.b32.cont [12/16] 0.0, 128
    %276 = vxpose.xlu0.b32.cont [13/16] 0.0, 128
    %277 = vxpose.xlu0.b32.cont [14/16] 0.0, 128
    %278 = vxpose.xlu0.b32.cont [15/16] 0.0, 128
    %279 = vxpose.xlu0.b32.end [16/16] 0.0, 128
    %v280 = vpop.trf.xlu0
    %v281 = vpop.trf.xlu0
    %v282 = vpop.trf.xlu0
    %v283 = vpop.trf.xlu0
    %v284 = vpop.trf.xlu0
    %v285 = vpop.trf.xlu0
    %v286 = vpop.trf.xlu0
    %v287 = vpop.trf.xlu0
    %v288 = vpop.trf.xlu0
    %v289 = vpop.trf.xlu0
    %v290 = vpop.trf.xlu0
    %v291 = vpop.trf.xlu0
    %v292 = vpop.trf.xlu0
    %v293 = vpop.trf.xlu0
    %v294 = vpop.trf.xlu0
    %v295 = vpop.trf.xlu0
    %vm296 = vcmask 261120
    %v298 = vsel %vm296, %v280, 0
    %v301 = vsel %vm296, %v281, 0
    %303 = vmatpush.msra.mxu0 0.0
    %304 = vmatpush.msra.mxu0 0.0
    %305 = vmatpush.msra.mxu0 0.0
    %306 = vmatpush.msra.mxu0 0.0
    %307 = vmatpush.msra.mxu0 0.0
    %308 = vmatpush.msra.mxu0 0.0
    %309 = vmatpush.msra.mxu0 0.0
    %310 = vmatpush.msra.mxu0 0.0
    %311 = vmatpush.msra.mxu0 0.0
    %312 = vmatpush.msra.mxu0 0.0
    %313 = vmatpush.msra.mxu0 0.0
    %314 = vmatpush.msra.mxu0 0.0
    %315 = vmatpush.msra.mxu0 %v46
    %316 = vmatpush.msra.mxu0 %v45
    %317 = vmatpush.msra.mxu0 %v44
    %318 = vmatpush.msra.mxu0 %v43
    %319 = vmatmul.f32.gmra.mxu0 %v298
    %v320 = vpop.f32.mrf.mxu0
    %v321 = vadd.f32 0.0, %v320
    %322 = vmatmul.f32.gmra.mxu0 %v301
    %v323 = vpop.f32.mrf.mxu0
    %v324 = vadd.f32 0.0, %v323
    %325 = vdwg.mxu0
    %vm326 = vcmp.gt.f32.partialorder %v321, 0.0
    %vm327 = vcmp.gt.f32.partialorder %v324, 0.0
    %v328 = vrsqrt.pop %v321
    %v329 = vmul.f32 %v328, %v321
    %v330 = vmul.f32 %v329, %v328
    %v331 = vmul.f32 0.5, %v330
    %v332 = vsub.f32 1.5, %v331
    %v333 = vmul.f32 %v328, %v332
    %vm334 = vweird.f32 %v321
    %vm335 = vweird.f32 %v328
    %vm336 = vmor %vm334, %vm335
    %v337 = vsel %vm336, %v328, %v333
    %v338 = vrsqrt.pop %v324
    %v339 = vmul.f32 %v338, %v324
    %v340 = vmul.f32 %v339, %v338
    %v341 = vmul.f32 0.5, %v340
    %v342 = vsub.f32 1.5, %v341
    %v343 = vmul.f32 %v338, %v342
    %vm344 = vweird.f32 %v324
    %vm345 = vweird.f32 %v338
    %vm346 = vmor %vm344, %vm345
    %v347 = vsel %vm346, %v338, %v343
    %v348 = vsel %vm326, %v337, 0.0
    %v349 = vsel %vm327, %v347, 0.0
    %vm350 = vcmask 130048
    %v352 = vsel %vm350, %v236, 0
    %v355 = vsel %vm350, %v237, 0
    %v358 = vsel %vm350, %v238, 0
    %v361 = vsel %vm350, %v239, 0
    %363 = vmatpush.msra.mxu0 0.0
    %364 = vmatpush.msra.mxu0 0.0
    %365 = vmatpush.msra.mxu0 0.0
    %366 = vmatpush.msra.mxu0 0.0
    %367 = vmatpush.msra.mxu0 0.0
    %368 = vmatpush.msra.mxu0 0.0
    %369 = vmatpush.msra.mxu0 0.0
    %370 = vmatpush.msra.mxu0 0.0
    %371 = vmatpush.msra.mxu0 0.0
    %372 = vmatpush.msra.mxu0 0.0
    %373 = vmatpush.msra.mxu0 0.0
    %374 = vmatpush.msra.mxu0 0.0
    %375 = vmatpush.msra.mxu0 0.0
    %376 = vmatpush.msra.mxu0 0.0
    %377 = vmatpush.msra.mxu0 %v349
    %378 = vmatpush.msra.mxu0 %v348
    %379 = vmatmul.f32.gmra.mxu0 %v352
    %v380 = vpop.f32.mrf.mxu0
    %v381 = vadd.f32 0.0, %v380
    %382 = vmatmul.f32.gmra.mxu0 %v355
    %v383 = vpop.f32.mrf.mxu0
    %v384 = vadd.f32 0.0, %v383
    %385 = vmatmul.f32.gmra.mxu0 %v358
    %v386 = vpop.f32.mrf.mxu0
    %v387 = vadd.f32 0.0, %v386
    %388 = vmatmul.f32.gmra.mxu0 %v361
    %v389 = vpop.f32.mrf.mxu0
    %v390 = vadd.f32 0.0, %v389
    %391 = vdwg.mxu0
    %v392 = vmul.f32 %v381, %v43
    %v393 = vmul.f32 %v384, %v44
    %v394 = vmul.f32 %v387, %v45
    %v395 = vmul.f32 %v390, %v46
    %v397 = vsel %vm350, %v260, 0
    %v400 = vsel %vm350, %v261, 0
    %v403 = vsel %vm350, %v262, 0
    %v406 = vsel %vm350, %v263, 0
    %408 = vmatpush.msra.mxu0 0.0
    %409 = vmatpush.msra.mxu0 0.0
    %410 = vmatpush.msra.mxu0 0.0
    %411 = vmatpush.msra.mxu0 0.0
    %412 = vmatpush.msra.mxu0 0.0
    %413 = vmatpush.msra.mxu0 0.0
    %414 = vmatpush.msra.mxu0 0.0
    %415 = vmatpush.msra.mxu0 0.0
    %416 = vmatpush.msra.mxu0 0.0
    %417 = vmatpush.msra.mxu0 0.0
    %418 = vmatpush.msra.mxu0 0.0
    %419 = vmatpush.msra.mxu0 0.0
    %420 = vmatpush.msra.mxu0 0.0
    %421 = vmatpush.msra.mxu0 0.0
    %422 = vmatpush.msra.mxu0 %v349
    %423 = vmatpush.msra.mxu0 %v348
    %424 = vmatmul.f32.gmra.mxu0 %v397
    %v425 = vpop.f32.mrf.mxu0
    %v426 = vadd.f32 0.0, %v425
    %427 = vmatmul.f32.gmra.mxu0 %v400
    %v428 = vpop.f32.mrf.mxu0
    %v429 = vadd.f32 0.0, %v428
    %430 = vmatmul.f32.gmra.mxu0 %v403
    %v431 = vpop.f32.mrf.mxu0
    %v432 = vadd.f32 0.0, %v431
    %433 = vmatmul.f32.gmra.mxu0 %v406
    %v434 = vpop.f32.mrf.mxu0
    %v435 = vadd.f32 0.0, %v434
    %436 = vdwg.mxu0
    %v437 = vmul.f32 %v392, %v426
    %v438 = vmul.f32 %v393, %v429
    %v439 = vmul.f32 %v394, %v432
    %v440 = vmul.f32 %v395, %v435
    %442 = vset.pattern.permute.xlu0 0
    %443 = vperm.xlu0 %442, %v437
    %v444 = vpop.permute.xlu0 %443
    %447 = vset.pattern.permute.xlu0 0
    %448 = vperm.xlu0 %447, %v438
    %v449 = vpop.permute.xlu0 %448
    %452 = vset.pattern.permute.xlu0 0
    %453 = vperm.xlu0 %452, %v439
    %v454 = vpop.permute.xlu0 %453
    %457 = vset.pattern.permute.xlu0 0
    %458 = vperm.xlu0 %457, %v440
    %v459 = vpop.permute.xlu0 %458
    %v461 = vmul.f32 %v444, %v236
    %v462 = vmul.f32 %v449, %v237
    %v463 = vmul.f32 %v454, %v238
    %v464 = vmul.f32 %v459, %v239
    %465 = vxpose.xlu0.b32.start [1/16] %v260, 128
    %466 = vxpose.xlu0.b32.cont [2/16] %v261, 128
    %467 = vxpose.xlu0.b32.cont [3/16] %v262, 128
    %468 = vxpose.xlu0.b32.cont [4/16] %v263, 128
    %469 = vxpose.xlu0.b32.cont [5/16] 0.0, 128
    %470 = vxpose.xlu0.b32.cont [6/16] 0.0, 128
    %471 = vxpose.xlu0.b32.cont [7/16] 0.0, 128
    %472 = vxpose.xlu0.b32.cont [8/16] 0.0, 128
    %473 = vxpose.xlu0.b32.cont [9/16] 0.0, 128
    %474 = vxpose.xlu0.b32.cont [10/16] 0.0, 128
    %475 = vxpose.xlu0.b32.cont [11/16] 0.0, 128
    %476 = vxpose.xlu0.b32.cont [12/16] 0.0, 128
    %477 = vxpose.xlu0.b32.cont [13/16] 0.0, 128
    %478 = vxpose.xlu0.b32.cont [14/16] 0.0, 128
    %479 = vxpose.xlu0.b32.cont [15/16] 0.0, 128
    %480 = vxpose.xlu0.b32.end [16/16] 0.0, 128
    %v481 = vpop.trf.xlu0
    %v482 = vpop.trf.xlu0
    %v483 = vpop.trf.xlu0
    %v484 = vpop.trf.xlu0
    %v485 = vpop.trf.xlu0
    %v486 = vpop.trf.xlu0
    %v487 = vpop.trf.xlu0
    %v488 = vpop.trf.xlu0
    %v489 = vpop.trf.xlu0
    %v490 = vpop.trf.xlu0
    %v491 = vpop.trf.xlu0
    %v492 = vpop.trf.xlu0
    %v493 = vpop.trf.xlu0
    %v494 = vpop.trf.xlu0
    %v495 = vpop.trf.xlu0
    %v496 = vpop.trf.xlu0
    %v498 = vsel %vm296, %v481, 0
    %v501 = vsel %vm296, %v482, 0
    %503 = vmatpush.msra.mxu0 0.0
    %504 = vmatpush.msra.mxu0 0.0
    %505 = vmatpush.msra.mxu0 0.0
    %506 = vmatpush.msra.mxu0 0.0
    %507 = vmatpush.msra.mxu0 0.0
    %508 = vmatpush.msra.mxu0 0.0
    %509 = vmatpush.msra.mxu0 0.0
    %510 = vmatpush.msra.mxu0 0.0
    %511 = vmatpush.msra.mxu0 0.0
    %512 = vmatpush.msra.mxu0 0.0
    %513 = vmatpush.msra.mxu0 0.0
    %514 = vmatpush.msra.mxu0 0.0
    %515 = vmatpush.msra.mxu0 %v464
    %516 = vmatpush.msra.mxu0 %v463
    %517 = vmatpush.msra.mxu0 %v462
    %518 = vmatpush.msra.mxu0 %v461
    %519 = vmatmul.f32.gmra.mxu0 %v498
    %v520 = vpop.f32.mrf.mxu0
    %v521 = vadd.f32 0.0, %v520
    %522 = vmatmul.f32.gmra.mxu0 %v501
    %v523 = vpop.f32.mrf.mxu0
    %v524 = vadd.f32 0.0, %v523
    %525 = vdwg.mxu0
    %v526 = vsub.f32 0.0, %v521
    %v527 = vsub.f32 0.0, %v524
    %v528 = vpack.c.bf16 %v213, %v212
    %s529 = scalar_lea.vmem [#allocation2], 128
    %v530 = vld [vmem:[%s529] sm:$0xf]
    %v531 = vld [vmem:[%s529 + $0x4] sm:$0xf]
    %v532 = vld [vmem:[%s529 + $0x8] sm:$0xf]
    %v533 = vld [vmem:[%s529 + $0xc] sm:$0xf]
    %v534 = vld [vmem:[%s529 + $0x10] sm:$0xf]
    %v535 = vld [vmem:[%s529 + $0x14] sm:$0xf]
    %v536 = vld [vmem:[%s529 + $0x18] sm:$0xf]
    %v537 = vld [vmem:[%s529 + $0x1c] sm:$0xf]
    %v538 = vld [vmem:[%s529 + $0x20] sm:$0xf]
    %v539 = vld [vmem:[%s529 + $0x24] sm:$0xf]
    %v540 = vld [vmem:[%s529 + $0x28] sm:$0xf]
    %v541 = vld [vmem:[%s529 + $0x2c] sm:$0xf]
    %v542 = vld [vmem:[%s529 + $0x30] sm:$0xf]
    %v543 = vld [vmem:[%s529 + $0x34] sm:$0xf]
    %v544 = vld [vmem:[%s529 + $0x38] sm:$0xf]
    %v545 = vld [vmem:[%s529 + $0x3c] sm:$0xf]
    %v547 = vsel %vm350, %v526, 0
    %v550 = vsel %vm350, %v527, 0
    %552 = vmatpush.msra.mxu0 0.0
    %553 = vmatpush.msra.mxu0 0.0
    %554 = vmatpush.msra.mxu0 0.0
    %555 = vmatpush.msra.mxu0 0.0
    %556 = vmatpush.msra.mxu0 0.0
    %557 = vmatpush.msra.mxu0 0.0
    %558 = vmatpush.msra.mxu0 0.0
    %559 = vmatpush.msra.mxu0 0.0
    %560 = vmatpush.msra.mxu0 0.0
    %561 = vmatpush.msra.mxu0 0.0
    %562 = vmatpush.msra.mxu0 0.0
    %563 = vmatpush.msra.mxu0 0.0
    %564 = vmatpush.msra.mxu0 0.0
    %565 = vmatpush.msra.mxu0 0.0
    %566 = vmatpush.msra.mxu0 %v213
    %567 = vmatpush.msra.mxu0 %v212
    %568 = vmatmul.f32.gmra.mxu0 %v547
    %v569 = vpop.f32.mrf.mxu0
    %v570 = vadd.f32 0.0, %v569
    %571 = vmatmul.f32.gmra.mxu0 %v550
    %v572 = vpop.f32.mrf.mxu0
    %v573 = vadd.f32 0.0, %v572
    %574 = vdwg.mxu0
    %v575 = vpack.c.bf16 %v573, %v570
    %s576 = scalar_lea.vmem [#allocation2], 192
    %v577 = vld [vmem:[%s576] sm:$0xf]
    %v578 = vld [vmem:[%s576 + $0x4] sm:$0xf]
    %v579 = vld [vmem:[%s576 + $0x8] sm:$0xf]
    %v580 = vld [vmem:[%s576 + $0xc] sm:$0xf]
    %v581 = vld [vmem:[%s576 + $0x10] sm:$0xf]
    %v582 = vld [vmem:[%s576 + $0x14] sm:$0xf]
    %v583 = vld [vmem:[%s576 + $0x18] sm:$0xf]
    %v584 = vld [vmem:[%s576 + $0x1c] sm:$0xf]
    %v585 = vld [vmem:[%s576 + $0x20] sm:$0xf]
    %v586 = vld [vmem:[%s576 + $0x24] sm:$0xf]
    %v587 = vld [vmem:[%s576 + $0x28] sm:$0xf]
    %v588 = vld [vmem:[%s576 + $0x2c] sm:$0xf]
    %v589 = vld [vmem:[%s576 + $0x30] sm:$0xf]
    %v590 = vld [vmem:[%s576 + $0x34] sm:$0xf]
    %v591 = vld [vmem:[%s576 + $0x38] sm:$0xf]
    %v592 = vld [vmem:[%s576 + $0x3c] sm:$0xf]
    %v609 = vunpack.c.l.b16 %v577
    %v610 = vunpack.c.l.b16 %v578
    %v611 = vunpack.c.l.b16 %v579
    %v612 = vunpack.c.l.b16 %v580
    %v613 = vunpack.c.l.b16 %v581
    %v614 = vunpack.c.l.b16 %v582
    %v615 = vunpack.c.l.b16 %v583
    %v616 = vunpack.c.l.b16 %v584
    %v617 = vunpack.c.l.b16 %v585
    %v618 = vunpack.c.l.b16 %v586
    %v619 = vunpack.c.l.b16 %v587
    %v620 = vunpack.c.l.b16 %v588
    %v621 = vunpack.c.l.b16 %v589
    %v622 = vunpack.c.l.b16 %v590
    %v623 = vunpack.c.l.b16 %v591
    %v624 = vunpack.c.l.b16 %v592
    %v625 = vpack.c.b16 %v610, %v609
    %v626 = vpack.c.b16 %v612, %v611
    %v627 = vpack.c.b16 %v614, %v613
    %v628 = vpack.c.b16 %v616, %v615
    %v629 = vpack.c.b16 %v618, %v617
    %v630 = vpack.c.b16 %v620, %v619
    %v631 = vpack.c.b16 %v622, %v621
    %v632 = vpack.c.b16 %v624, %v623
    %641 = vmatpush.bf16.msra.mxu0 %v632
    %642 = vmatpush.bf16.msra.mxu0 %v631
    %643 = vmatpush.bf16.msra.mxu0 %v630
    %644 = vmatpush.bf16.msra.mxu0 %v629
    %645 = vmatpush.bf16.msra.mxu0 %v628
    %646 = vmatpush.bf16.msra.mxu0 %v627
    %647 = vmatpush.bf16.msra.mxu0 %v626
    %648 = vmatpush.bf16.msra.mxu0 %v625
    %649 = vmatmul.bf16.gmra.mxu0 %v575
    %v650 = vpop.f32.mrf.mxu0
    %v651 = vadd.f32 0.0, %v650
    %v652 = vpop.f32.mrf.mxu0
    %v653 = vadd.f32 0.0, %v652
    %654 = vdwg.mxu0
    %v671 = vunpack.c.l.b16 %v530
    %v672 = vunpack.c.l.b16 %v531
    %v673 = vunpack.c.l.b16 %v532
    %v674 = vunpack.c.l.b16 %v533
    %v675 = vunpack.c.l.b16 %v534
    %v676 = vunpack.c.l.b16 %v535
    %v677 = vunpack.c.l.b16 %v536
    %v678 = vunpack.c.l.b16 %v537
    %v679 = vunpack.c.l.b16 %v538
    %v680 = vunpack.c.l.b16 %v539
    %v681 = vunpack.c.l.b16 %v540
    %v682 = vunpack.c.l.b16 %v541
    %v683 = vunpack.c.l.b16 %v542
    %v684 = vunpack.c.l.b16 %v543
    %v685 = vunpack.c.l.b16 %v544
    %v686 = vunpack.c.l.b16 %v545
    %v687 = vpack.c.b16 %v672, %v671
    %v688 = vpack.c.b16 %v674, %v673
    %v689 = vpack.c.b16 %v676, %v675
    %v690 = vpack.c.b16 %v678, %v677
    %v691 = vpack.c.b16 %v680, %v679
    %v692 = vpack.c.b16 %v682, %v681
    %v693 = vpack.c.b16 %v684, %v683
    %v694 = vpack.c.b16 %v686, %v685
    %703 = vmatpush.bf16.msra.mxu0 %v694
    %704 = vmatpush.bf16.msra.mxu0 %v693
    %705 = vmatpush.bf16.msra.mxu0 %v692
    %706 = vmatpush.bf16.msra.mxu0 %v691
    %707 = vmatpush.bf16.msra.mxu0 %v690
    %708 = vmatpush.bf16.msra.mxu0 %v689
    %709 = vmatpush.bf16.msra.mxu0 %v688
    %710 = vmatpush.bf16.msra.mxu0 %v687
    %711 = vmatmul.bf16.gmra.mxu0 %v528
    %v712 = vpop.f32.mrf.mxu0
    %v713 = vadd.f32 %v651, %v712
    %v714 = vpop.f32.mrf.mxu0
    %v715 = vadd.f32 %v653, %v714
    %716 = vdwg.mxu0
    %v717 = vld [vmem:[%s4 + $0x2] sm:$0x1]
    %v718 = vperm.slane %v717, 0
    %v719 = vadd.f32 %v713, %v718
    %v720 = vadd.f32 %v715, %v718
    %v721 = vmax.f32 %v719, 0.0
    %v722 = vmax.f32 %v720, 0.0
    %v723 = vpack.c.bf16 %v722, %v721
    %s724 = scalar_lea.vmem [#allocation2], 256
    %v725 = vld [vmem:[%s724] sm:$0xf]
    %v726 = vld [vmem:[%s724 + $0x4] sm:$0xf]
    %v727 = vld [vmem:[%s724 + $0x8] sm:$0xf]
    %v728 = vld [vmem:[%s724 + $0xc] sm:$0xf]
    %v729 = vld [vmem:[%s724 + $0x10] sm:$0xf]
    %v730 = vld [vmem:[%s724 + $0x14] sm:$0xf]
    %v731 = vld [vmem:[%s724 + $0x18] sm:$0xf]
    %v732 = vld [vmem:[%s724 + $0x1c] sm:$0xf]
    %v733 = vld [vmem:[%s724 + $0x20] sm:$0xf]
    %v734 = vld [vmem:[%s724 + $0x24] sm:$0xf]
    %v735 = vld [vmem:[%s724 + $0x28] sm:$0xf]
    %v736 = vld [vmem:[%s724 + $0x2c] sm:$0xf]
    %v737 = vld [vmem:[%s724 + $0x30] sm:$0xf]
    %v738 = vld [vmem:[%s724 + $0x34] sm:$0xf]
    %v739 = vld [vmem:[%s724 + $0x38] sm:$0xf]
    %v740 = vld [vmem:[%s724 + $0x3c] sm:$0xf]
    %v741 = vld [vmem:[%s4 + $0x3] sm:$0x1]
    %v742 = vperm.slane %v741, 0
    %v759 = vunpack.c.l.b16 %v725
    %v760 = vunpack.c.l.b16 %v726
    %v761 = vunpack.c.l.b16 %v727
    %v762 = vunpack.c.l.b16 %v728
    %v763 = vunpack.c.l.b16 %v729
    %v764 = vunpack.c.l.b16 %v730
    %v765 = vunpack.c.l.b16 %v731
    %v766 = vunpack.c.l.b16 %v732
    %v767 = vunpack.c.l.b16 %v733
    %v768 = vunpack.c.l.b16 %v734
    %v769 = vunpack.c.l.b16 %v735
    %v770 = vunpack.c.l.b16 %v736
    %v771 = vunpack.c.l.b16 %v737
    %v772 = vunpack.c.l.b16 %v738
    %v773 = vunpack.c.l.b16 %v739
    %v774 = vunpack.c.l.b16 %v740
    %v775 = vpack.c.b16 %v760, %v759
    %v776 = vpack.c.b16 %v762, %v761
    %v777 = vpack.c.b16 %v764, %v763
    %v778 = vpack.c.b16 %v766, %v765
    %v779 = vpack.c.b16 %v768, %v767
    %v780 = vpack.c.b16 %v770, %v769
    %v781 = vpack.c.b16 %v772, %v771
    %v782 = vpack.c.b16 %v774, %v773
    %791 = vmatpush.bf16.msra.mxu0 %v782
    %792 = vmatpush.bf16.msra.mxu0 %v781
    %793 = vmatpush.bf16.msra.mxu0 %v780
    %794 = vmatpush.bf16.msra.mxu0 %v779
    %795 = vmatpush.bf16.msra.mxu0 %v778
    %796 = vmatpush.bf16.msra.mxu0 %v777
    %797 = vmatpush.bf16.msra.mxu0 %v776
    %798 = vmatpush.bf16.msra.mxu0 %v775
    %799 = vmatmul.bf16.gmra.mxu0 %v723
    %v800 = vpop.f32.mrf.mxu0
    %v801 = vadd.f32 %v742, %v800
    %v802 = vpop.f32.mrf.mxu0
    %v803 = vadd.f32 %v742, %v802
    %804 = vdwg.mxu0
    %v805 = vmax.f32 %v801, 0.0
    %v806 = vmax.f32 %v803, 0.0
    %v807 = vpack.c.bf16 %v806, %v805
    %s808 = scalar_lea.vmem [#allocation2], 320
    %v809 = vld [vmem:[%s808] sm:$0xf]
    %v810 = vld [vmem:[%s808 + $0x4] sm:$0xf]
    %v811 = vld [vmem:[%s808 + $0x8] sm:$0xf]
    %v812 = vld [vmem:[%s808 + $0xc] sm:$0xf]
    %v813 = vld [vmem:[%s808 + $0x10] sm:$0xf]
    %v814 = vld [vmem:[%s808 + $0x14] sm:$0xf]
    %v815 = vld [vmem:[%s808 + $0x18] sm:$0xf]
    %v816 = vld [vmem:[%s808 + $0x1c] sm:$0xf]
    %v817 = vld [vmem:[%s808 + $0x20] sm:$0xf]
    %v818 = vld [vmem:[%s808 + $0x24] sm:$0xf]
    %v819 = vld [vmem:[%s808 + $0x28] sm:$0xf]
    %v820 = vld [vmem:[%s808 + $0x2c] sm:$0xf]
    %v821 = vld [vmem:[%s808 + $0x30] sm:$0xf]
    %v822 = vld [vmem:[%s808 + $0x34] sm:$0xf]
    %v823 = vld [vmem:[%s808 + $0x38] sm:$0xf]
    %v824 = vld [vmem:[%s808 + $0x3c] sm:$0xf]
    %v825 = vld [vmem:[%s4 + $0x4] sm:$0x1]
    %v826 = vperm.slane %v825, 0
    %v843 = vunpack.c.l.b16 %v809
    %v844 = vunpack.c.l.b16 %v810
    %v845 = vunpack.c.l.b16 %v811
    %v846 = vunpack.c.l.b16 %v812
    %v847 = vunpack.c.l.b16 %v813
    %v848 = vunpack.c.l.b16 %v814
    %v849 = vunpack.c.l.b16 %v815
    %v850 = vunpack.c.l.b16 %v816
    %v851 = vunpack.c.l.b16 %v817
    %v852 = vunpack.c.l.b16 %v818
    %v853 = vunpack.c.l.b16 %v819
    %v854 = vunpack.c.l.b16 %v820
    %v855 = vunpack.c.l.b16 %v821
    %v856 = vunpack.c.l.b16 %v822
    %v857 = vunpack.c.l.b16 %v823
    %v858 = vunpack.c.l.b16 %v824
    %v859 = vpack.c.b16 %v844, %v843
    %v860 = vpack.c.b16 %v846, %v845
    %v861 = vpack.c.b16 %v848, %v847
    %v862 = vpack.c.b16 %v850, %v849
    %v863 = vpack.c.b16 %v852, %v851
    %v864 = vpack.c.b16 %v854, %v853
    %v865 = vpack.c.b16 %v856, %v855
    %v866 = vpack.c.b16 %v858, %v857
    %875 = vmatpush.bf16.msra.mxu0 %v866
    %876 = vmatpush.bf16.msra.mxu0 %v865
    %877 = vmatpush.bf16.msra.mxu0 %v864
    %878 = vmatpush.bf16.msra.mxu0 %v863
    %879 = vmatpush.bf16.msra.mxu0 %v862
    %880 = vmatpush.bf16.msra.mxu0 %v861
    %881 = vmatpush.bf16.msra.mxu0 %v860
    %882 = vmatpush.bf16.msra.mxu0 %v859
    %883 = vmatmul.bf16.gmra.mxu0 %v807
    %v884 = vpop.f32.mrf.mxu0
    %v885 = vadd.f32 %v826, %v884
    %v886 = vpop.f32.mrf.mxu0
    %v887 = vadd.f32 %v826, %v886
    %888 = vdwg.mxu0
    %v889 = vmax.f32 %v885, 0.0
    %v890 = vmax.f32 %v887, 0.0
    %891 = vst [vmem:[#allocation5] sm:$0xff] %v889
    %892 = vst [vmem:[#allocation5 + $0x8] sm:$0xff] %v890
    // Predicated region
    $region26: #{tpu_custom_call.1} parent=1 // pred_check
      _
    $region27: #{tpu_custom_call.1} parent=1 // pred_check_branch
      %894 = sbr.rel (0) target = $region29
    $region28: #{tpu_custom_call.1} parent=1 // pred_region
      %896 = vsyncadd [#allocation4], 0
      %s897 = sshll.u32 [#allocation5], 4
      %s898 = int_to_ptr.vmem [resolvable:$true] %s897
      %s899 = sshll.u32 %s5, 4
      %s900 = int_to_ptr.hbm [resolvable:$true] %s899
      %905 = dma.vmem_to_hbm [thread:$0]  %s898, 256, %s900, [#allocation4], 128, 128, 8
    $region29: #{tpu_custom_call.1} parent=1 // pred_fallthru
      _
    // Predicated region
    $region30: #{tpu_custom_call.1} parent=1 // pred_check
      _
    $region31: #{tpu_custom_call.1} parent=1 // pred_check_branch
      %907 = sbr.rel (0) target = $region33
    $region32: #{tpu_custom_call.1} parent=1 // pred_region
      %909 = dma.done [#allocation4], 256
    $region33: #{tpu_custom_call.1} parent=1 // pred_fallthru
      _
    %910 = vsyncpa [#allocation3], 1
    %911 = vsyncpa [#allocation4], 1

</llo_original>
